<compile_context>
chip_gen: v5e
topology: v5e:2x2
jax: 0.10.0
libtpu: 0.0.40
codegen_flags: <defaults>
</compile_context>

<pallas_src>
import jax
import jax.numpy as jnp
import numpy as np
from jax.experimental import pallas as pl
from jax.experimental.pallas import tpu as pltpu

_LANES = 128


def grid_codec_kernel(x_ref, out_ref):
    # x_ref / out_ref: [block_rows, 128] int32 tiles (lane-dense full vregs;
    # unmasked vld/vst except at the Pallas-masked grid edge).
    x0 = (x_ref[...] - 1).astype(jnp.float32)

    # encode: floor-div / mod by 10, done in f32 with multiplies (exact for
    # the valid id range; avoids vector integer divide and f32 divide chains).
    q = jnp.floor(x0 * jnp.float32(0.1))          # == x0 // 10
    r = x0 - jnp.float32(10.0) * q                # == x0 %  10
    row = q * jnp.float32(0.1) + jnp.float32(0.05)
    col = r * jnp.float32(0.1) + jnp.float32(0.05)

    # decode: same floor structure as the PyTorch reference.
    pred = (jnp.float32(10.0) * jnp.floor(jnp.float32(10.0) * row)
            + jnp.floor(jnp.float32(10.0) * col) + jnp.float32(1.0))
    out_ref[...] = pred.astype(jnp.int32)


def _jnp_forward(x_flat):
    """Fused XLA elementwise path (tiny-N fast path; exact integer // and %)."""
    x0 = x_flat - 1
    row = (x0 // 10).astype(jnp.float32) / 10.0 + 0.05
    col = (x0 % 10).astype(jnp.float32) / 10.0 + 0.05
    pred = 10.0 * jnp.floor(10.0 * row) + jnp.floor(10.0 * col) + 1.0
    return pred.astype(jnp.int32)


def _choose_block_rows(rows, tile_rows):
    """Lane-row tile: multiple of 8, <= tile_rows, and small enough to give
    >= 2 grid steps whenever rows > 8 (so v7x's two TensorCores both work)."""
    tr = max(8, (int(tile_rows) // 8) * 8)
    if rows > 8:
        half = ((-(-rows // 2)) + 7) // 8 * 8      # cdiv(rows, 2), mult. of 8
        tr = min(tr, half)
    return min(tr, ((rows + 7) // 8) * 8)


def grid_encoder_decoder_forward(x, *, tile_rows=4096, min_pallas_elems=1024):
    """x: any-shape array of 1-based grid ids. Returns int32 preds, same shape."""
    x_arr = jnp.asarray(x, jnp.int32)
    x_flat = x_arr.reshape(-1)
    n = int(x_flat.shape[0])

    if n == 0:
        return jnp.zeros(x_arr.shape, jnp.int32)
    if n < min_pallas_elems:
        # Sub-vreg sizes: pallas_call launch + pad overhead dominates; let XLA
        # fuse a plain elementwise expression instead.
        return _jnp_forward(x_flat).reshape(x_arr.shape)

    rows = -(-n // _LANES)
    n_lane = rows * _LANES
    if n_lane == n:
        # Contiguous reshape -> no HBM copy around the custom call.
        x2d = x_flat.reshape(rows, _LANES)
    else:
        # Ragged: pad only up to the next 128 boundary (<= 127 extra elems).
        x2d = jnp.pad(x_flat, (0, n_lane - n),
                      constant_values=1).reshape(rows, _LANES)

    block_rows = _choose_block_rows(rows, tile_rows)
    grid_n = -(-rows // block_rows)                # partial edge block masked

    out2d = pl.pallas_call(
        grid_codec_kernel,
        out_shape=jax.ShapeDtypeStruct((rows, _LANES), jnp.int32),
        grid_spec=pltpu.PrefetchScalarGridSpec(
            num_scalar_prefetch=0,
            grid=(grid_n,),
            in_specs=[pl.BlockSpec((block_rows, _LANES), lambda i: (i, 0))],
            out_specs=pl.BlockSpec((block_rows, _LANES), lambda i: (i, 0)),
        ),
        compiler_params=pltpu.CompilerParams(
            dimension_semantics=("parallel",)),
        cost_estimate=pl.CostEstimate(
            flops=10 * n_lane, transcendentals=0, bytes_accessed=8 * n_lane),
    )(x2d)

    out_flat = out2d.reshape(-1)
    if n_lane != n:
        out_flat = out_flat[:n]
    return out_flat.reshape(x_arr.shape)


def reference_forward(x):
    """Pure-JAX reference mirroring the PyTorch forward (integer // and %)."""
    x0 = jnp.asarray(x, jnp.int32).reshape(-1) - 1
    row = (x0 // 10).astype(jnp.float32) / 10.0 + 0.05
    col = (x0 % 10).astype(jnp.float32) / 10.0 + 0.05
    pred = 10.0 * jnp.floor(10.0 * row) + jnp.floor(10.0 * col) + 1.0
    return pred.astype(jnp.int32)


if __name__ == "__main__":
    key = jax.random.PRNGKey(0)
    k1, k2, k3 = jax.random.split(key, 3)

    # Case 1: 128-aligned N -> copy-free reshape path; tile_rows=8 forces a
    # multi-step "parallel" grid (v7x megacore sharding) even at small N.
    N1 = 2048
    x1 = jax.random.randint(k1, (N1,), 1, 101, dtype=jnp.int32)
    out1 = jax.block_until_ready(grid_encoder_decoder_forward(x1, tile_rows=8))
    np.testing.assert_array_equal(np.asarray(out1), np.asarray(reference_forward(x1)))
    np.testing.assert_array_equal(np.asarray(out1), np.asarray(x1))   # round trip

    # Case 2: ragged N -> pads only to the next 128 boundary; the partial
    # grid-edge row-block is masked by Pallas (default fat tile).
    N2 = 1234
    x2 = jax.random.randint(k2, (N2,), 1, 101, dtype=jnp.int32)
    out2 = jax.block_until_ready(grid_encoder_decoder_forward(x2))
    np.testing.assert_array_equal(np.asarray(out2), np.asarray(reference_forward(x2)))
    np.testing.assert_array_equal(np.asarray(out2), np.asarray(x2))   # round trip

    # Case 3: tiny N -> plain-jnp fast path (no pallas_call launch overhead).
    N3 = 50
    x3 = jax.random.randint(k3, (N3,), 1, 101, dtype=jnp.int32)
    out3 = jax.block_until_ready(grid_encoder_decoder_forward(x3))
    np.testing.assert_array_equal(np.asarray(out3), np.asarray(reference_forward(x3)))
    np.testing.assert_array_equal(np.asarray(out3), np.asarray(x3))   # round trip

    print("KERNEL_OK")
</pallas_src>

<mosaic_0001>
module attributes {stable_mosaic.version = 11 : i64} {
  func.func @grid_codec_kernel(%arg0: i32, %arg1: memref<8x128xi32, #tpu.memory_space<vmem>>, %arg2: memref<8x128xi32, #tpu.memory_space<vmem>>) attributes {dimension_semantics = [#tpu.dimension_semantics<parallel>], iteration_bounds = array<i64: 2>, scalar_prefetch = 0 : i64, scratch_operands = 0 : i64, tpu.core_type = #tpu.core_type<tc>, window_params = [{transform_indices = @transform_0, window_bounds = array<i64: 8, 128>}, {transform_indices = @transform_1, window_bounds = array<i64: 8, 128>}]} {
    %c0 = arith.constant 0 : index
    %c0_0 = arith.constant 0 : index
    %0 = vector.load %arg1[%c0, %c0_0] : memref<8x128xi32, #tpu.memory_space<vmem>>, vector<8x128xi32>
    %c1_i32 = arith.constant 1 : i32
    %1 = vector.broadcast %c1_i32 : i32 to vector<8x128xi32>
    %2 = arith.subi %0, %1 : vector<8x128xi32>
    %3 = arith.sitofp %2 : vector<8x128xi32> to vector<8x128xf32>
    %cst = arith.constant 1.000000e-01 : f32
    %4 = vector.broadcast %cst : f32 to vector<8x128xf32>
    %5 = arith.mulf %3, %4 : vector<8x128xf32>
    %6 = math.floor %5 : vector<8x128xf32>
    %cst_1 = arith.constant 1.000000e+01 : f32
    %7 = vector.broadcast %cst_1 : f32 to vector<8x128xf32>
    %8 = arith.mulf %7, %6 : vector<8x128xf32>
    %9 = arith.subf %3, %8 : vector<8x128xf32>
    %cst_2 = arith.constant 1.000000e-01 : f32
    %10 = vector.broadcast %cst_2 : f32 to vector<8x128xf32>
    %11 = arith.mulf %6, %10 : vector<8x128xf32>
    %cst_3 = arith.constant 5.000000e-02 : f32
    %12 = vector.broadcast %cst_3 : f32 to vector<8x128xf32>
    %13 = arith.addf %11, %12 : vector<8x128xf32>
    %cst_4 = arith.constant 1.000000e-01 : f32
    %14 = vector.broadcast %cst_4 : f32 to vector<8x128xf32>
    %15 = arith.mulf %9, %14 : vector<8x128xf32>
    %cst_5 = arith.constant 5.000000e-02 : f32
    %16 = vector.broadcast %cst_5 : f32 to vector<8x128xf32>
    %17 = arith.addf %15, %16 : vector<8x128xf32>
    %cst_6 = arith.constant 1.000000e+01 : f32
    %18 = vector.broadcast %cst_6 : f32 to vector<8x128xf32>
    %19 = arith.mulf %18, %13 : vector<8x128xf32>
    %20 = math.floor %19 : vector<8x128xf32>
    %cst_7 = arith.constant 1.000000e+01 : f32
    %21 = vector.broadcast %cst_7 : f32 to vector<8x128xf32>
    %22 = arith.mulf %21, %20 : vector<8x128xf32>
    %cst_8 = arith.constant 1.000000e+01 : f32
    %23 = vector.broadcast %cst_8 : f32 to vector<8x128xf32>
    %24 = arith.mulf %23, %17 : vector<8x128xf32>
    %25 = math.floor %24 : vector<8x128xf32>
    %26 = arith.addf %22, %25 : vector<8x128xf32>
    %cst_9 = arith.constant 1.000000e+00 : f32
    %27 = vector.broadcast %cst_9 : f32 to vector<8x128xf32>
    %28 = arith.addf %26, %27 : vector<8x128xf32>
    %29 = arith.fptosi %28 : vector<8x128xf32> to vector<8x128xi32>
    %c0_10 = arith.constant 0 : index
    %c0_11 = arith.constant 0 : index
    %30 = vector.load %arg2[%c0_10, %c0_11] : memref<8x128xi32, #tpu.memory_space<vmem>>, vector<8x128xi32>
    tpu.vector_store %arg2[%c0_10, %c0_11], %29 {strides = array<i32>} : memref<8x128xi32, #tpu.memory_space<vmem>>, vector<8x128xi32>,
    return
  }
  func.func @transform_0(%arg0: i32) -> (i32, i32) {
    %c0_i32 = arith.constant 0 : i32
    %c0_i32_0 = arith.constant 0 : i32
    return %arg0, %c0_i32 : i32, i32
  }
  func.func @transform_1(%arg0: i32) -> (i32, i32) {
    %c0_i32 = arith.constant 0 : i32
    %c0_i32_0 = arith.constant 0 : i32
    return %arg0, %c0_i32 : i32, i32
  }
}

</mosaic_0001>

<llo_original>
// kernel: tpu_custom_call.1
$region0: #{tpu_custom_call.1}
  #allocation0 [shape = 'u32[]', space=smem, size = 0x4, offset = 0x4, fixed_abs, tag = 'smem constant byte address 0x4 - core index']
  #allocation1 [shape = 'u32[72,128]{1,0:T(1,128)}', space=vmem, size = 0x9000, scoped, tag = 'internal scratch']
  %s0 = inlined_call_operand.hbm [shape: s32[16,128], index: 0, kind: input, shape index: {}]
  %s1 = inlined_call_operand.hbm [shape: s32[16,128], index: 1, kind: output, shape index: {}]
  %s2 = sld [smem:[#allocation0]]
  $region41: #{tpu_custom_call.1} parent=0
    _
  %s4 = ssub.s32 1, %s2
  %s5 = scalar_select 0, %s4, %s2
  $region1: #{tpu_custom_call.1} parent=0
    #allocation2 [shape = 'u8[8192]{0}', space=vmem, size = 0x2000, scoped, tag = 'input window, operand 0']
    #allocation3 [shape = 's32[2]{0}', space=sflag, size = 0x8, scoped, tag = 'scoped memory for tpu_custom_call.1']
    #allocation4 [shape = 's32[2]{0}', space=sflag, size = 0x8, scoped, tag = 'scoped memory for tpu_custom_call.1']
    #allocation5 [shape = 'u8[8192]{0}', space=vmem, size = 0x2000, scoped, tag = 'output window, operand 0']
    %6 = vsyncpa [#allocation3], 0
    %s7 = scalar_lea.sflag [#allocation3], 1
    %8 = vsyncpa %s7, 0
    %9 = vsyncpa [#allocation4], 0
    %s10 = scalar_lea.sflag [#allocation4], 1
    %11 = vsyncpa %s10, 0
    loop: start=0, step=1, limit=4
    $region2: #{tpu_custom_call.1} parent=1 // loop_pre_header
      _
    $region3: #{tpu_custom_call.1} parent=1 // loop_header
      %s13 = sphi 0, %s17
      %p14 = scmp.ge.s32.totalorder %s13, 4
      %s23 = sphi 0, %s25
      %s26 = sphi 0, %s23
      %s27 = sphi 0, %s26
      %s43 = sphi 0, %s27
      %s49 = sphi 0, %s51
      %s52 = sphi 0, %s49
      %s53 = sphi 0, %s52
      %s69 = sphi 0, %s53
    $region4: #{tpu_custom_call.1} parent=1 // loop_header_branch
      %16 = sbr.rel (%p14) target = $region8
    $region5: #{tpu_custom_call.1} parent=1 // loop_body
      %s18 = ssub.s32 %s13, 1
      %s19 = ssub.s32 %s13, 2
      %s20 = sadd.s32 %s13, 1
      %s21 = ssub.s32 %s13, %s20
      %p22 = scmp.eq.s32.totalorder %s21, 0
      %s24 = sadd.s32 %s23, 1
      %s25 = scalar_select %p22, %s23, %s24
      %p28 = pneg %p22
      %p29 = scmp.eq.s32.totalorder %s13, 1
      %p30 = por %p28, %p29
      %p31 = scmp.ne.s32.totalorder %s23, %s26
      %p32 = scmp.eq.s32.totalorder %s13, 0
      %p33 = por %p31, %p32
      %p34 = scmp.ne.s32.totalorder %s23, %s26
      %p35 = scmp.eq.s32.totalorder %s18, 1
      %p36 = por %p34, %p35
      %p37 = scmp.ne.s32.totalorder %s26, %s27
      %p38 = scmp.eq.s32.totalorder %s18, 0
      %p39 = por %p37, %p38
      %p40 = scmp.ne.s32.totalorder %s26, %s27
      %p41 = scmp.eq.s32.totalorder %s19, 1
      %p42 = por %p40, %p41
      %p44 = scmp.ne.s32.totalorder %s27, %s43
      %p45 = scmp.eq.s32.totalorder %s19, 0
      %p46 = por %p44, %p45
      %s47 = ssub.s32 %s13, %s20
      %p48 = scmp.eq.s32.totalorder %s47, 0
      %s50 = sadd.s32 %s49, 1
      %s51 = scalar_select %p48, %s49, %s50
      %p54 = pneg %p48
      %p55 = scmp.eq.s32.totalorder %s13, 1
      %p56 = por %p54, %p55
      %p57 = scmp.ne.s32.totalorder %s49, %s52
      %p58 = scmp.eq.s32.totalorder %s13, 0
      %p59 = por %p57, %p58
      %p60 = scmp.ne.s32.totalorder %s49, %s52
      %p61 = scmp.eq.s32.totalorder %s18, 1
      %p62 = por %p60, %p61
      %p63 = scmp.ne.s32.totalorder %s52, %s53
      %p64 = scmp.eq.s32.totalorder %s18, 0
      %p65 = por %p63, %p64
      %p66 = scmp.ne.s32.totalorder %s52, %s53
      %p67 = scmp.eq.s32.totalorder %s19, 1
      %p68 = por %p66, %p67
      %p70 = scmp.ne.s32.totalorder %s53, %s69
      %p71 = scmp.eq.s32.totalorder %s19, 0
      %p72 = por %p70, %p71
      %p73 = scmp.le.s32.totalorder 1, %s13
      %p74 = scmp.lt.s32.totalorder %s13, 3
      %p75 = pnand %p73, %p74
      %p76 = pneg %p75
      // Predicated region
      $region9: #{tpu_custom_call.1} parent=5 // pred_check
        _
      $region10: #{tpu_custom_call.1} parent=5 // pred_check_branch
        %78 = sbr.rel (%p75) target = $region12
      $region11: #{tpu_custom_call.1} parent=5 // pred_region
        %s79 = ssub.s32 %s13, 1
      $region12: #{tpu_custom_call.1} parent=5 // pred_fallthru
        _
      %p80 = scmp.lt.s32.totalorder %s13, 2
      // Predicated region
      $region13: #{tpu_custom_call.1} parent=5 // pred_check
        %p81 = pneg %p80
      $region14: #{tpu_custom_call.1} parent=5 // pred_check_branch
        %83 = sbr.rel (%p81) target = $region16
      $region15: #{tpu_custom_call.1} parent=5 // pred_region
        // Predicated region
        $region17: #{tpu_custom_call.1} parent=15 // pred_check
          %p84 = pneg %p33
        $region18: #{tpu_custom_call.1} parent=15 // pred_check_branch
          %86 = sbr.rel (%p84) target = $region20
        $region19: #{tpu_custom_call.1} parent=15 // pred_region
          %s87 = sand.u32 %s23, 1
          %s88 = scalar_lea.sflag [#allocation3], %s87
          %s89 = sand.u32 %s23, 1
          %s90 = smul.addr %s89, 8
          %s91 = scalar_lea.vmem [#allocation2], %s90
          %93 = vsyncadd %s88, 0
          %s94 = smul.addr %s13, 8
          %s95 = scalar_lea.hbm %s0, %s94
          %s97 = sshll.u32 %s95, 4
          %s98 = int_to_ptr.hbm [resolvable:$true] %s97
          %s99 = sshll.u32 %s91, 4
          %s100 = int_to_ptr.vmem [resolvable:$true] %s99
          %102 = dma.hbm_to_vmem [thread:$0]  %s98, 128, %s100, %s88
        $region20: #{tpu_custom_call.1} parent=15 // pred_fallthru
          _
      $region16: #{tpu_custom_call.1} parent=5 // pred_fallthru
        _
      %p103 = scmp.le.s32.totalorder 1, %s13
      %p104 = scmp.lt.s32.totalorder %s13, 3
      %p105 = pnand %p103, %p104
      %p106 = pneg %p105
      // Predicated region
      $region21: #{tpu_custom_call.1} parent=5 // pred_check
        _
      $region22: #{tpu_custom_call.1} parent=5 // pred_check_branch
        %108 = sbr.rel (%p105) target = $region24
      $region23: #{tpu_custom_call.1} parent=5 // pred_region
        %s109 = ssub.s32 %s13, 1
        %s110 = sand.u32 %s26, 1
        %s111 = scalar_lea.sflag [#allocation3], %s110
        %s112 = sand.u32 %s26, 1
        %s113 = smul.addr %s112, 8
        %s114 = scalar_lea.vmem [#allocation2], %s113
        // Predicated region
        $region25: #{tpu_custom_call.1} parent=23 // pred_check
          %p115 = pneg %p39
        $region26: #{tpu_custom_call.1} parent=23 // pred_check_branch
          %117 = sbr.rel (%p115) target = $region28
        $region27: #{tpu_custom_call.1} parent=23 // pred_region
          %119 = dma.done %s111, 128
        $region28: #{tpu_custom_call.1} parent=23 // pred_fallthru
          _
        %s120 = sand.u32 %s26, 1
        %s121 = scalar_lea.sflag [#allocation3], %s120
        %s122 = sand.u32 %s26, 1
        %s123 = smul.addr %s122, 8
        %s124 = scalar_lea.vmem [#allocation2], %s123
        %p125 = pneg %p39
        %p126 = pneg %p36
        %p127 = pneg %p65
        %p128 = pneg %p62
        %s129 = sand.u32 %s52, 1
        %s130 = scalar_lea.sflag [#allocation4], %s129
        %s131 = sand.u32 %s52, 1
        %s132 = smul.addr %s131, 8
        %s133 = scalar_lea.vmem [#allocation5], %s132
        %v134 = vld [vmem:[%s114] sm:$0xff]
        %v135 = vsub.s32 %v134, 1
        %v136 = vcvt.s32.f32 %v135
        %v137 = vmul.f32 %v136, 0.1
        %v138 = vfloor.f32 %v137
        %v139 = vmul.f32 %v138, 10.0
        %v140 = vsub.f32 %v136, %v139
        %v141 = vmul.f32 %v138, 0.1
        %v142 = vadd.f32 %v141, 0.05
        %v143 = vmul.f32 %v140, 0.1
        %v144 = vadd.f32 %v143, 0.05
        %v145 = vmul.f32 %v142, 10.0
        %v146 = vfloor.f32 %v145
        %v147 = vmul.f32 %v146, 10.0
        %v148 = vmul.f32 %v144, 10.0
        %v149 = vfloor.f32 %v148
        %v150 = vadd.f32 %v147, %v149
        %v151 = vadd.f32 %v150, 1.0
        %v152 = vcvt.f32.s32.to.zero.pseudo %v151
        %153 = vst [vmem:[%s133] sm:$0xff] %v152
        %s154 = sand.u32 %s52, 1
        %s155 = scalar_lea.sflag [#allocation4], %s154
        %s156 = sand.u32 %s52, 1
        %s157 = smul.addr %s156, 8
        %s158 = scalar_lea.vmem [#allocation5], %s157
        // Predicated region
        $region29: #{tpu_custom_call.1} parent=23 // pred_check
          %p159 = pneg %p62
        $region30: #{tpu_custom_call.1} parent=23 // pred_check_branch
          %161 = sbr.rel (%p159) target = $region32
        $region31: #{tpu_custom_call.1} parent=23 // pred_region
          %163 = vsyncadd %s155, 0
          %s164 = smul.addr %s18, 8
          %s165 = scalar_lea.hbm %s1, %s164
          %s167 = sshll.u32 %s158, 4
          %s168 = int_to_ptr.vmem [resolvable:$true] %s167
          %s169 = sshll.u32 %s165, 4
          %s170 = int_to_ptr.hbm [resolvable:$true] %s169
          %172 = dma.vmem_to_hbm [thread:$0]  %s168, 128, %s170, %s155
        $region32: #{tpu_custom_call.1} parent=23 // pred_fallthru
          _
      $region24: #{tpu_custom_call.1} parent=5 // pred_fallthru
        _
      %p173 = scmp.le.s32.totalorder 2, %s13
      // Predicated region
      $region33: #{tpu_custom_call.1} parent=5 // pred_check
        %p174 = pneg %p173
      $region34: #{tpu_custom_call.1} parent=5 // pred_check_branch
        %176 = sbr.rel (%p174) target = $region36
      $region35: #{tpu_custom_call.1} parent=5 // pred_region
        %s177 = ssub.s32 %s13, 2
        // Predicated region
        $region37: #{tpu_custom_call.1} parent=35 // pred_check
          %p178 = pneg %p68
        $region38: #{tpu_custom_call.1} parent=35 // pred_check_branch
          %180 = sbr.rel (%p178) target = $region40
        $region39: #{tpu_custom_call.1} parent=35 // pred_region
          %s181 = sand.u32 %s53, 1
          %s182 = scalar_lea.sflag [#allocation4], %s181
          %s183 = sand.u32 %s53, 1
          %s184 = smul.addr %s183, 8
          %s185 = scalar_lea.vmem [#allocation5], %s184
          %187 = dma.done %s182, 128
        $region40: #{tpu_custom_call.1} parent=35 // pred_fallthru
          _
      $region36: #{tpu_custom_call.1} parent=5 // pred_fallthru
        _
    $region6: #{tpu_custom_call.1} parent=1 // loop_footer
      %s17 = sadd.s32 1, %s13
    $region7: #{tpu_custom_call.1} parent=1 // loop_footer_branch
      %12 = sbr.rel target = $region3
    $region8: #{tpu_custom_call.1} parent=1 // loop_exit
      _
    %188 = vsyncpa [#allocation3], 1
    %s189 = scalar_lea.sflag [#allocation3], 1
    %190 = vsyncpa %s189, 1
    %191 = vsyncpa [#allocation4], 1
    %s192 = scalar_lea.sflag [#allocation4], 1
    %193 = vsyncpa %s192, 1

</llo_original>
